<compile_context>
chip_gen: v7x
topology: tpu7x:2x2x1
jax: 0.10.0
libtpu: 0.0.40
codegen_flags: <defaults>
</compile_context>

<pallas_src>
import functools

import jax
import jax.numpy as jnp
from jax.experimental import pallas as pl
from jax.experimental.pallas import tpu as pltpu

_HIDDEN = 64
_MAX_BT = 8192                    # lane-padded x double-buffer stays << 32 MiB
_VMEM_LIMIT = 32 * 1024 * 1024    # raises v5e's 16 MiB default; matches v6e/v7x default


def _round_up(x, m):
    return (x + m - 1) // m * m


def _pick_bt(B, batch_tile):
    """Lane-aligned batch tile (multiple of 128), large by default, and split
    into >= 2 grid steps when B >= 256 so both v7x TensorCores get work."""
    batch_tile = min(_round_up(max(int(batch_tile), 1), 128), _MAX_BT)
    bt = min(batch_tile, _round_up(B, 128))
    if B >= 256:
        bt = min(bt, _round_up(-(-B // 2), 128))
    return bt


def _critic_kernel(x_ref, w1_ref, b1_ref, w2_ref, b2_ref, w3_ref, b3_ref, out_ref,
                   *, x_is_feature_major):
    """One batch tile of the fused critic MLP.

    x_ref  : (bt, n_states) natural layout  OR  (n_states, bt) feature-major
    w1_ref : (64, n_states)   fc1 weight (PyTorch layout, cast to x dtype)
    b1_ref : (64, 1)          fc1 bias (column, f32)
    w2_ref : (64, 64)         fc2 weight (f32)
    b2_ref : (64, 1)          fc2 bias (column, f32)
    w3_ref : (64, 1)          fc3 weight (column, f32)
    b3_ref : (1,) in SMEM     fc3 bias (scalar)
    out_ref: (1, bt)          lane-dense value tile
    """
    x = x_ref[...]

    if x_is_feature_major:
        # Lane-dense (n_states, bt) tile: plain NN matmul, no relayout. MXU, f32 acc.
        h1 = jnp.dot(w1_ref[...], x, preferred_element_type=jnp.float32)
    else:
        # (bt, n_states) tile: contract n_states of both operands ("NT") so the
        # result lands as (64, bt) with the batch on the lane axis.
        # TODO(synk): if the upstream producer can emit (n_states, B) state, use
        # critic_forward_feature_major and skip this orientation entirely.
        h1 = jax.lax.dot_general(
            w1_ref[...], x,
            dimension_numbers=(((1,), (1,)), ((), ())),
            preferred_element_type=jnp.float32,
        )
    h1 = jnp.maximum(h1 + b1_ref[...], 0.0)

    # fc2: (64, 64) @ (64, bt) -> (64, bt).  MXU.
    h2 = jnp.dot(w2_ref[...], h1, preferred_element_type=jnp.float32)
    h2 = jnp.maximum(h2 + b2_ref[...], 0.0)

    # fc3 (single output feature): VPU multiply + sublane reduce instead of an
    # N=1 MXU pass.  Result is already lane-dense (1, bt).
    v = jnp.sum(h2 * w3_ref[...], axis=0, keepdims=True) + b3_ref[0]
    out_ref[...] = v.astype(out_ref.dtype)


def _critic_pallas_call(x, w1, b1, w2, b2, w3, b3, bt, x_is_feature_major):
    H = _HIDDEN
    if x_is_feature_major:
        n_states, B_in = x.shape
        x_spec = pl.BlockSpec((n_states, bt), lambda i: (0, i))
    else:
        B_in, n_states = x.shape
        x_spec = pl.BlockSpec((bt, n_states), lambda i: (i, 0))
    num_tiles = pl.cdiv(B_in, bt)

    # fc1 runs in the state dtype (bf16 state -> bf16 x bf16 MXU with f32 acc);
    # everything after the first matmul stays in f32.
    w1c = w1.astype(x.dtype)
    b1c = b1.reshape(H, 1).astype(jnp.float32)
    w2c = w2.astype(jnp.float32)
    b2c = b2.reshape(H, 1).astype(jnp.float32)
    w3c = w3.reshape(H, 1).astype(jnp.float32)   # fc3.weight (1, H) -> column (H, 1)
    b3s = b3.reshape(1).astype(jnp.float32)

    param_bytes = 4 * (w1.size + b1.size + w2.size + b2.size + w3.size + b3.size)
    cost = pl.CostEstimate(
        flops=2 * B_in * (n_states * H + H * H + H),
        transcendentals=0,
        bytes_accessed=B_in * n_states * x.dtype.itemsize + B_in * 4 + param_bytes,
    )

    return pl.pallas_call(
        functools.partial(_critic_kernel, x_is_feature_major=x_is_feature_major),
        out_shape=jax.ShapeDtypeStruct((1, B_in), jnp.float32),
        grid_spec=pltpu.PrefetchScalarGridSpec(
            num_scalar_prefetch=0,
            grid=(num_tiles,),
            in_specs=[
                # batch-tiled activations (partial last block handled by the grid)
                x_spec,
                # weights / biases: constant index_map -> fetched once, stay resident
                pl.BlockSpec((H, n_states), lambda i: (0, 0)),
                pl.BlockSpec((H, 1), lambda i: (0, 0)),
                pl.BlockSpec((H, H), lambda i: (0, 0)),
                pl.BlockSpec((H, 1), lambda i: (0, 0)),
                pl.BlockSpec((H, 1), lambda i: (0, 0)),
                # fc3 bias: scalar in SMEM (avoids a padded (8,128) VMEM tile)
                pl.BlockSpec(memory_space=pltpu.MemorySpace.SMEM),
            ],
            out_specs=pl.BlockSpec((1, bt), lambda i: (0, i)),
        ),
        compiler_params=pltpu.CompilerParams(
            dimension_semantics=("parallel",),       # shard batch tiles across TCs (v7x)
            vmem_limit_bytes=_VMEM_LIMIT,
        ),
        cost_estimate=cost,
    )(x, w1c, b1c, w2c, b2c, w3c, b3s)


@functools.partial(jax.jit, static_argnames=("batch_tile",))
def critic_forward(state, w1, b1, w2, b2, w3, b3, batch_tile=2048):
    """state: (B, n_states) -> value: (B, 1).  Matches CriticNetwork.forward."""
    B, n_states = state.shape
    if B == 0:
        return jnp.zeros((0, 1), jnp.float32)
    if state.dtype != jnp.bfloat16:
        state = state.astype(jnp.float32)

    bt = _pick_bt(B, batch_tile)
    if B < bt:
        # Single tile smaller than one block: append a (<128)-row zero tail so the
        # block exactly covers the array.  Never a full-array pad for large B.
        state = jnp.concatenate(
            [state, jnp.zeros((bt - B, n_states), state.dtype)], axis=0)

    out = _critic_pallas_call(state, w1, b1, w2, b2, w3, b3, bt,
                              x_is_feature_major=False)
    # (1, B_in) lane-dense kernel output -> (B, 1) like nn.Linear.  Free plumbing.
    return out.reshape(-1, 1)[:B]


@functools.partial(jax.jit, static_argnames=("batch_tile",))
def critic_forward_feature_major(state_fm, w1, b1, w2, b2, w3, b3, batch_tile=2048):
    """Same forward, but `state_fm` is supplied feature-major as (n_states, B)
    (e.g. by a producer that can emit that layout).  The input tile is then
    lane-dense: ~8x less VMEM per buffer and no per-step relayout."""
    n_states, B = state_fm.shape
    if B == 0:
        return jnp.zeros((0, 1), jnp.float32)
    if state_fm.dtype != jnp.bfloat16:
        state_fm = state_fm.astype(jnp.float32)

    bt = _pick_bt(B, batch_tile)
    if B < bt:
        state_fm = jnp.concatenate(
            [state_fm, jnp.zeros((n_states, bt - B), state_fm.dtype)], axis=1)

    out = _critic_pallas_call(state_fm, w1, b1, w2, b2, w3, b3, bt,
                              x_is_feature_major=True)
    return out.reshape(-1, 1)[:B]


def init_params(key, n_states, hidden=_HIDDEN):
    """Deterministic init mimicking PyTorch nn.Linear default (uniform +-1/sqrt(fan_in)).
    Weights stored in PyTorch layout: (out_features, in_features)."""
    def linear(key, fan_in, fan_out):
        kw, kb = jax.random.split(key)
        bound = 1.0 / jnp.sqrt(jnp.float32(fan_in))
        w = jax.random.uniform(kw, (fan_out, fan_in), jnp.float32, -bound, bound)
        b = jax.random.uniform(kb, (fan_out,), jnp.float32, -bound, bound)
        return w, b

    k1, k2, k3 = jax.random.split(key, 3)
    w1, b1 = linear(k1, n_states, hidden)
    w2, b2 = linear(k2, hidden, hidden)
    w3, b3 = linear(k3, hidden, 1)
    return w1, b1, w2, b2, w3, b3


def critic_forward_ref(state, w1, b1, w2, b2, w3, b3):
    h1 = jnp.maximum(state @ w1.T + b1, 0.0)
    h2 = jnp.maximum(h1 @ w2.T + b2, 0.0)
    return h2 @ w3.T + b3


# TODO(synk): optimizer (Adam), device placement, and checkpoint save/load from the
# PyTorch module are host-side training utilities, not part of the forward pass.

if __name__ == "__main__":
    B, N_STATES = 8, 16
    key = jax.random.PRNGKey(0)
    kp, kx = jax.random.split(key)

    params = init_params(kp, N_STATES)
    state = jax.random.normal(kx, (B, N_STATES), jnp.float32)

    value = jax.block_until_ready(critic_forward(state, *params))
    ref = critic_forward_ref(state, *params)
    assert value.shape == (B, 1)
    assert jnp.allclose(value, ref, atol=2e-5, rtol=2e-5), "mismatch vs reference"

    # Multi-tile + ragged batch: exercises the partial-last-block path (no pad copy)
    # and guarantees >= 2 grid steps for the parallel axis.
    B2 = 300
    state2 = jax.random.normal(jax.random.fold_in(kx, 1), (B2, N_STATES), jnp.float32)
    value2 = jax.block_until_ready(critic_forward(state2, *params, batch_tile=128))
    ref2 = critic_forward_ref(state2, *params)
    assert value2.shape == (B2, 1)
    assert jnp.allclose(value2, ref2, atol=2e-5, rtol=2e-5), "mismatch (multi-tile)"

    # Producer-supplied feature-major (n_states, B) layout: lane-dense input tiles.
    value3 = jax.block_until_ready(
        critic_forward_feature_major(state2.T, *params, batch_tile=128))
    assert value3.shape == (B2, 1)
    assert jnp.allclose(value3, ref2, atol=2e-5, rtol=2e-5), "mismatch (feature-major)"

    print("KERNEL_OK")
</pallas_src>

<mosaic_0001>
module attributes {stable_mosaic.version = 11 : i64} {
  func.func @_critic_kernel(%arg0: i32, %arg1: memref<128x16xf32, #tpu.memory_space<vmem>>, %arg2: memref<64x16xf32, #tpu.memory_space<vmem>>, %arg3: memref<64x1xf32, #tpu.memory_space<vmem>>, %arg4: memref<64x64xf32, #tpu.memory_space<vmem>>, %arg5: memref<64x1xf32, #tpu.memory_space<vmem>>, %arg6: memref<64x1xf32, #tpu.memory_space<vmem>>, %arg7: memref<1xf32, #tpu.memory_space<smem>>, %arg8: memref<1x128xf32, #tpu.memory_space<vmem>>) attributes {dimension_semantics = [#tpu.dimension_semantics<parallel>], iteration_bounds = array<i64: 1>, scalar_prefetch = 0 : i64, scratch_operands = 0 : i64, tpu.core_type = #tpu.core_type<tc>, window_params = [{transform_indices = @transform_0, window_bounds = array<i64: 128, 16>}, {pipeline_mode = #tpu.pipeline_mode<synchronous>, transform_indices = @transform_1, window_bounds = array<i64: 64, 16>}, {pipeline_mode = #tpu.pipeline_mode<synchronous>, transform_indices = @transform_2, window_bounds = array<i64: 64, 1>}, {pipeline_mode = #tpu.pipeline_mode<synchronous>, transform_indices = @transform_3, window_bounds = array<i64: 64, 64>}, {pipeline_mode = #tpu.pipeline_mode<synchronous>, transform_indices = @transform_4, window_bounds = array<i64: 64, 1>}, {pipeline_mode = #tpu.pipeline_mode<synchronous>, transform_indices = @transform_5, window_bounds = array<i64: 64, 1>}, {transform_indices = @transform_6, window_bounds = array<i64: 1>}, {transform_indices = @transform_7, window_bounds = array<i64: 1, 128>}]} {
    %c0 = arith.constant 0 : index
    %c0_0 = arith.constant 0 : index
    %0 = vector.load %arg1[%c0, %c0_0] : memref<128x16xf32, #tpu.memory_space<vmem>>, vector<128x16xf32>
    %c0_1 = arith.constant 0 : index
    %c0_2 = arith.constant 0 : index
    %1 = vector.load %arg2[%c0_1, %c0_2] : memref<64x16xf32, #tpu.memory_space<vmem>>, vector<64x16xf32>
    %cst = arith.constant dense<0.000000e+00> : vector<64x128xf32>
    %2 = tpu.matmul %1, %0, %cst {dimension_numbers = #tpu.dot_dimension_numbers<[1], [1], [0], [0], [0, 0, 1, 0], [], []>} : vector<64x16xf32>, vector<128x16xf32>, vector<64x128xf32> -> vector<64x128xf32>
    %c0_3 = arith.constant 0 : index
    %c0_4 = arith.constant 0 : index
    %3 = vector.load %arg3[%c0_3, %c0_4] : memref<64x1xf32, #tpu.memory_space<vmem>>, vector<64x1xf32>
    %4 = vector.broadcast %3 : vector<64x1xf32> to vector<64x128xf32>
    %5 = arith.addf %2, %4 : vector<64x128xf32>
    %cst_5 = arith.constant 0.000000e+00 : f32
    %6 = vector.broadcast %cst_5 : f32 to vector<64x128xf32>
    %7 = arith.maximumf %5, %6 : vector<64x128xf32>
    %c0_6 = arith.constant 0 : index
    %c0_7 = arith.constant 0 : index
    %8 = vector.load %arg4[%c0_6, %c0_7] : memref<64x64xf32, #tpu.memory_space<vmem>>, vector<64x64xf32>
    %cst_8 = arith.constant dense<0.000000e+00> : vector<64x128xf32>
    %9 = tpu.matmul %8, %7, %cst_8 {dimension_numbers = #tpu.dot_dimension_numbers<[1], [0], [0], [1], [0, 0, 1, 1], [], []>} : vector<64x64xf32>, vector<64x128xf32>, vector<64x128xf32> -> vector<64x128xf32>
    %c0_9 = arith.constant 0 : index
    %c0_10 = arith.constant 0 : index
    %10 = vector.load %arg5[%c0_9, %c0_10] : memref<64x1xf32, #tpu.memory_space<vmem>>, vector<64x1xf32>
    %11 = vector.broadcast %10 : vector<64x1xf32> to vector<64x128xf32>
    %12 = arith.addf %9, %11 : vector<64x128xf32>
    %cst_11 = arith.constant 0.000000e+00 : f32
    %13 = vector.broadcast %cst_11 : f32 to vector<64x128xf32>
    %14 = arith.maximumf %12, %13 : vector<64x128xf32>
    %c0_12 = arith.constant 0 : index
    %c0_13 = arith.constant 0 : index
    %15 = vector.load %arg6[%c0_12, %c0_13] : memref<64x1xf32, #tpu.memory_space<vmem>>, vector<64x1xf32>
    %16 = vector.broadcast %15 : vector<64x1xf32> to vector<64x128xf32>
    %17 = arith.mulf %14, %16 : vector<64x128xf32>
    %cst_14 = arith.constant dense<0.000000e+00> : vector<128xf32>
    %18 = vector.multi_reduction <add>, %17, %cst_14 [0] : vector<64x128xf32> to vector<128xf32>
    %19 = vector.shape_cast %18 : vector<128xf32> to vector<1x128xf32>
    %c0_15 = arith.constant 0 : index
    %20 = memref.load %arg7[%c0_15] : memref<1xf32, #tpu.memory_space<smem>>
    %21 = vector.broadcast %20 : f32 to vector<1x128xf32>
    %22 = arith.addf %19, %21 : vector<1x128xf32>
    %c0_16 = arith.constant 0 : index
    %c0_17 = arith.constant 0 : index
    %23 = vector.load %arg8[%c0_16, %c0_17] : memref<1x128xf32, #tpu.memory_space<vmem>>, vector<1x128xf32>
    tpu.vector_store %arg8[%c0_16, %c0_17], %22 {strides = array<i32>} : memref<1x128xf32, #tpu.memory_space<vmem>>, vector<1x128xf32>,
    return
  }
  func.func @transform_0(%arg0: i32) -> (i32, i32) {
    %c0_i32 = arith.constant 0 : i32
    %c0_i32_0 = arith.constant 0 : i32
    return %arg0, %c0_i32 : i32, i32
  }
  func.func @transform_1(%arg0: i32) -> (i32, i32) {
    %c0_i32 = arith.constant 0 : i32
    %c0_i32_0 = arith.constant 0 : i32
    %c0_i32_1 = arith.constant 0 : i32
    return %c0_i32, %c0_i32_0 : i32, i32
  }
  func.func @transform_2(%arg0: i32) -> (i32, i32) {
    %c0_i32 = arith.constant 0 : i32
    %c0_i32_0 = arith.constant 0 : i32
    %c0_i32_1 = arith.constant 0 : i32
    return %c0_i32, %c0_i32_0 : i32, i32
  }
  func.func @transform_3(%arg0: i32) -> (i32, i32) {
    %c0_i32 = arith.constant 0 : i32
    %c0_i32_0 = arith.constant 0 : i32
    %c0_i32_1 = arith.constant 0 : i32
    return %c0_i32, %c0_i32_0 : i32, i32
  }
  func.func @transform_4(%arg0: i32) -> (i32, i32) {
    %c0_i32 = arith.constant 0 : i32
    %c0_i32_0 = arith.constant 0 : i32
    %c0_i32_1 = arith.constant 0 : i32
    return %c0_i32, %c0_i32_0 : i32, i32
  }
  func.func @transform_5(%arg0: i32) -> (i32, i32) {
    %c0_i32 = arith.constant 0 : i32
    %c0_i32_0 = arith.constant 0 : i32
    %c0_i32_1 = arith.constant 0 : i32
    return %c0_i32, %c0_i32_0 : i32, i32
  }
  func.func @transform_6(%arg0: i32) -> i32 {
    %c0_i32 = arith.constant 0 : i32
    %c0_i32_0 = arith.constant 0 : i32
    return %c0_i32 : i32
  }
  func.func @transform_7(%arg0: i32) -> (i32, i32) {
    %c0_i32 = arith.constant 0 : i32
    %c0_i32_0 = arith.constant 0 : i32
    return %c0_i32, %arg0 : i32, i32
  }
}

</mosaic_0001>

<llo_original>
// kernel: critic_forward.1
$region0: #{critic_forward.1}
  #allocation0 [shape = 'u32[]', space=smem, size = 0x4, offset = 0x4, fixed_abs, tag = 'smem constant byte address 0x4 - core index']
  #allocation1 [shape = 'u32[144,128]{1,0:T(1,128)}', space=vmem, size = 0x12000, scoped, tag = 'internal scratch']
  #allocation2 [shape = 'f32[1]{0:T(128)S(6)}', space=smem, size = 0x200, scoped, tag = 'scoped memory for critic_forward.1']
  %s0 = inlined_call_operand.vmem [shape: f32[128,16], index: 0, kind: input, shape index: {}]
  %s1 = inlined_call_operand.vmem [shape: f32[64,16], index: 1, kind: input, shape index: {}]
  %s2 = inlined_call_operand.vmem [shape: f32[64,1], index: 2, kind: input, shape index: {}]
  %s3 = inlined_call_operand.vmem [shape: f32[64,64], index: 3, kind: input, shape index: {}]
  %s4 = inlined_call_operand.vmem [shape: f32[64,1], index: 4, kind: input, shape index: {}]
  %s5 = inlined_call_operand.vmem [shape: f32[64,1], index: 5, kind: input, shape index: {}]
  %s6 = inlined_call_operand.<no memory space> [shape: f32[1], index: 6, kind: input, shape index: {}]
  %s7 = inlined_call_operand.vmem [shape: f32[1,128], index: 7, kind: output, shape index: {}]
  %s8 = sld [smem:[#allocation0]]
  $region38: #{critic_forward.1} parent=0
    _
  %s10 = ssub.s32 1, %s8
  %s11 = scalar_select 0, %s10, %s8
  %12 = sst [smem:[#allocation2]] %s6
  // Predicated region
  $region2: #{critic_forward.1} parent=0 // pred_check
    _
  $region3: #{critic_forward.1} parent=0 // pred_check_branch
    %14 = sbr.rel (0) target = $region5
  $region4: #{critic_forward.1} parent=0 // pred_region
    _
  $region5: #{critic_forward.1} parent=0 // pred_fallthru
    _
  // Predicated region
  $region6: #{critic_forward.1} parent=0 // pred_check
    _
  $region7: #{critic_forward.1} parent=0 // pred_check_branch
    %16 = sbr.rel (0) target = $region9
  $region8: #{critic_forward.1} parent=0 // pred_region
    _
  $region9: #{critic_forward.1} parent=0 // pred_fallthru
    _
  // Predicated region
  $region10: #{critic_forward.1} parent=0 // pred_check
    _
  $region11: #{critic_forward.1} parent=0 // pred_check_branch
    %18 = sbr.rel (0) target = $region13
  $region12: #{critic_forward.1} parent=0 // pred_region
    _
  $region13: #{critic_forward.1} parent=0 // pred_fallthru
    _
  // Predicated region
  $region14: #{critic_forward.1} parent=0 // pred_check
    _
  $region15: #{critic_forward.1} parent=0 // pred_check_branch
    %20 = sbr.rel (0) target = $region17
  $region16: #{critic_forward.1} parent=0 // pred_region
    _
  $region17: #{critic_forward.1} parent=0 // pred_fallthru
    _
  // Predicated region
  $region18: #{critic_forward.1} parent=0 // pred_check
    _
  $region19: #{critic_forward.1} parent=0 // pred_check_branch
    %22 = sbr.rel (0) target = $region21
  $region20: #{critic_forward.1} parent=0 // pred_region
    _
  $region21: #{critic_forward.1} parent=0 // pred_fallthru
    _
  // Predicated region
  $region22: #{critic_forward.1} parent=0 // pred_check
    _
  $region23: #{critic_forward.1} parent=0 // pred_check_branch
    %24 = sbr.rel (0) target = $region25
  $region24: #{critic_forward.1} parent=0 // pred_region
    _
  $region25: #{critic_forward.1} parent=0 // pred_fallthru
    _
  // Predicated region
  $region26: #{critic_forward.1} parent=0 // pred_check
    _
  $region27: #{critic_forward.1} parent=0 // pred_check_branch
    %26 = sbr.rel (0) target = $region29
  $region28: #{critic_forward.1} parent=0 // pred_region
    _
  $region29: #{critic_forward.1} parent=0 // pred_fallthru
    _
  %v27 = vld [vmem:[%s0] sm:$0xff]
  %v28 = vld [vmem:[%s0 + $0x8] sm:$0xff]
  %v29 = vld [vmem:[%s0 + $0x10] sm:$0xff]
  %v30 = vld [vmem:[%s0 + $0x18] sm:$0xff]
  %v31 = vld [vmem:[%s0 + $0x20] sm:$0xff]
  %v32 = vld [vmem:[%s0 + $0x28] sm:$0xff]
  %v33 = vld [vmem:[%s0 + $0x30] sm:$0xff]
  %v34 = vld [vmem:[%s0 + $0x38] sm:$0xff]
  %v35 = vld [vmem:[%s0 + $0x40] sm:$0xff]
  %v36 = vld [vmem:[%s0 + $0x48] sm:$0xff]
  %v37 = vld [vmem:[%s0 + $0x50] sm:$0xff]
  %v38 = vld [vmem:[%s0 + $0x58] sm:$0xff]
  %v39 = vld [vmem:[%s0 + $0x60] sm:$0xff]
  %v40 = vld [vmem:[%s0 + $0x68] sm:$0xff]
  %v41 = vld [vmem:[%s0 + $0x70] sm:$0xff]
  %v42 = vld [vmem:[%s0 + $0x78] sm:$0xff]
  %v43 = vld [vmem:[%s1] sm:$0xff]
  %v44 = vld [vmem:[%s1 + $0x8] sm:$0xff]
  %v45 = vld [vmem:[%s1 + $0x10] sm:$0xff]
  %v46 = vld [vmem:[%s1 + $0x18] sm:$0xff]
  %v47 = vld [vmem:[%s1 + $0x20] sm:$0xff]
  %v48 = vld [vmem:[%s1 + $0x28] sm:$0xff]
  %v49 = vld [vmem:[%s1 + $0x30] sm:$0xff]
  %v50 = vld [vmem:[%s1 + $0x38] sm:$0xff]
  %v51 = vld [vmem:[%s2] sm:$0xff]
  %v52 = vld [vmem:[%s2 + $0x8] sm:$0xff]
  %v53 = vld [vmem:[%s2 + $0x10] sm:$0xff]
  %v54 = vld [vmem:[%s2 + $0x18] sm:$0xff]
  %v55 = vld [vmem:[%s2 + $0x20] sm:$0xff]
  %v56 = vld [vmem:[%s2 + $0x28] sm:$0xff]
  %v57 = vld [vmem:[%s2 + $0x30] sm:$0xff]
  %v58 = vld [vmem:[%s2 + $0x38] sm:$0xff]
  %60 = vset.pattern.permute.xlu0 0
  %61 = vperm.xlu0 %60, %v51
  %v62 = vpop.permute.xlu0 %61
  %65 = vset.pattern.permute.xlu0 0
  %66 = vperm.xlu0 %65, %v52
  %v67 = vpop.permute.xlu0 %66
  %70 = vset.pattern.permute.xlu0 0
  %71 = vperm.xlu0 %70, %v53
  %v72 = vpop.permute.xlu0 %71
  %75 = vset.pattern.permute.xlu0 0
  %76 = vperm.xlu0 %75, %v54
  %v77 = vpop.permute.xlu0 %76
  %80 = vset.pattern.permute.xlu0 0
  %81 = vperm.xlu0 %80, %v55
  %v82 = vpop.permute.xlu0 %81
  %85 = vset.pattern.permute.xlu0 0
  %86 = vperm.xlu0 %85, %v56
  %v87 = vpop.permute.xlu0 %86
  %90 = vset.pattern.permute.xlu0 0
  %91 = vperm.xlu0 %90, %v57
  %v92 = vpop.permute.xlu0 %91
  %95 = vset.pattern.permute.xlu0 0
  %96 = vperm.xlu0 %95, %v58
  %v97 = vpop.permute.xlu0 %96
  %vm99 = vcmask 130048
  %v101 = vsel %vm99, %v43, 0
  %v104 = vsel %vm99, %v44, 0
  %v107 = vsel %vm99, %v45, 0
  %v110 = vsel %vm99, %v46, 0
  %v113 = vsel %vm99, %v47, 0
  %v116 = vsel %vm99, %v48, 0
  %v119 = vsel %vm99, %v49, 0
  %v122 = vsel %vm99, %v50, 0
  %v125 = vsel %vm99, %v27, 0
  %v128 = vsel %vm99, %v28, 0
  %v131 = vsel %vm99, %v29, 0
  %v134 = vsel %vm99, %v30, 0
  %v137 = vsel %vm99, %v31, 0
  %v140 = vsel %vm99, %v32, 0
  %v143 = vsel %vm99, %v33, 0
  %v146 = vsel %vm99, %v34, 0
  %v149 = vsel %vm99, %v35, 0
  %v152 = vsel %vm99, %v36, 0
  %v155 = vsel %vm99, %v37, 0
  %v158 = vsel %vm99, %v38, 0
  %v161 = vsel %vm99, %v39, 0
  %v164 = vsel %vm99, %v40, 0
  %v167 = vsel %vm99, %v41, 0
  %v170 = vsel %vm99, %v42, 0
  %172 = vmatprep.subr.mxu0 0.0
  %173 = vmatpush1.xpose.msra.mxu0 %v125
  %174 = vmatprep.subr.mxu0 0.0
  %175 = vmatpush1.xpose.msra.mxu0 %v128
  %176 = vmatprep.subr.mxu0 0.0
  %177 = vmatpush1.xpose.msra.mxu0 %v131
  %178 = vmatprep.subr.mxu0 0.0
  %179 = vmatpush1.xpose.msra.mxu0 %v134
  %180 = vmatprep.subr.mxu0 0.0
  %181 = vmatpush1.xpose.msra.mxu0 %v137
  %182 = vmatprep.subr.mxu0 0.0
  %183 = vmatpush1.xpose.msra.mxu0 %v140
  %184 = vmatprep.subr.mxu0 0.0
  %185 = vmatpush1.xpose.msra.mxu0 %v143
  %186 = vmatprep.subr.mxu0 0.0
  %187 = vmatpush1.xpose.msra.mxu0 %v146
  %188 = vmatprep.subr.mxu0 0.0
  %189 = vmatpush1.xpose.msra.mxu0 %v149
  %190 = vmatprep.subr.mxu0 0.0
  %191 = vmatpush1.xpose.msra.mxu0 %v152
  %192 = vmatprep.subr.mxu0 0.0
  %193 = vmatpush1.xpose.msra.mxu0 %v155
  %194 = vmatprep.subr.mxu0 0.0
  %195 = vmatpush1.xpose.msra.mxu0 %v158
  %196 = vmatprep.subr.mxu0 0.0
  %197 = vmatpush1.xpose.msra.mxu0 %v161
  %198 = vmatprep.subr.mxu0 0.0
  %199 = vmatpush1.xpose.msra.mxu0 %v164
  %200 = vmatprep.subr.mxu0 0.0
  %201 = vmatpush1.xpose.msra.mxu0 %v167
  %202 = vmatprep.subr.mxu0 0.0
  %203 = vmatpush1.xpose.msra.mxu0 %v170
  %204 = vmatprep.subr.mxu0 0.0
  %205 = vmatpush1.xpose.msra.mxu0 0.0
  %206 = vmatprep.subr.mxu0 0.0
  %207 = vmatpush1.xpose.msra.mxu0 0.0
  %208 = vmatprep.subr.mxu0 0.0
  %209 = vmatpush1.xpose.msra.mxu0 0.0
  %210 = vmatprep.subr.mxu0 0.0
  %211 = vmatpush1.xpose.msra.mxu0 0.0
  %212 = vmatprep.subr.mxu0 0.0
  %213 = vmatpush1.xpose.msra.mxu0 0.0
  %214 = vmatprep.subr.mxu0 0.0
  %215 = vmatpush1.xpose.msra.mxu0 0.0
  %216 = vmatprep.subr.mxu0 0.0
  %217 = vmatpush1.xpose.msra.mxu0 0.0
  %218 = vmatprep.subr.mxu0 0.0
  %219 = vmatpush1.xpose.msra.mxu0 0.0
  %220 = vmatprep.subr.mxu0 0.0
  %221 = vmatpush1.xpose.msra.mxu0 0.0
  %222 = vmatprep.subr.mxu0 0.0
  %223 = vmatpush1.xpose.msra.mxu0 0.0
  %224 = vmatprep.subr.mxu0 0.0
  %225 = vmatpush1.xpose.msra.mxu0 0.0
  %226 = vmatprep.subr.mxu0 0.0
  %227 = vmatpush1.xpose.msra.mxu0 0.0
  %228 = vmatprep.subr.mxu0 0.0
  %229 = vmatpush1.xpose.msra.mxu0 0.0
  %230 = vmatprep.subr.mxu0 0.0
  %231 = vmatpush1.xpose.msra.mxu0 0.0
  %232 = vmatprep.subr.mxu0 0.0
  %233 = vmatpush1.xpose.msra.mxu0 0.0
  %234 = vmatprep.subr.mxu0 0.0
  %235 = vmatpush1.xpose.msra.mxu0 0.0
  %236 = vmatprep.mubr.f32.mxu0 0.0
  %237 = vmatmul.mubr.f32.gmra.mrb[0].mxu0 %v101
  %v238 = vpop.f32.mrb[0].mxu0
  %v239 = vadd.f32 %v62, %v238
  %v240 = vpop.f32.mrb[0].mxu0
  %241 = vmatprep.mubr.f32.mxu0 0.0
  %242 = vmatmul.mubr.f32.gmra.mrb[0].mxu0 %v104
  %v243 = vpop.f32.mrb[0].mxu0
  %v244 = vadd.f32 %v67, %v243
  %v245 = vpop.f32.mrb[0].mxu0
  %246 = vmatprep.mubr.f32.mxu0 0.0
  %247 = vmatmul.mubr.f32.gmra.mrb[0].mxu0 %v107
  %v248 = vpop.f32.mrb[0].mxu0
  %v249 = vadd.f32 %v72, %v248
  %v250 = vpop.f32.mrb[0].mxu0
  %251 = vmatprep.mubr.f32.mxu0 0.0
  %252 = vmatmul.mubr.f32.gmra.mrb[0].mxu0 %v110
  %v253 = vpop.f32.mrb[0].mxu0
  %v254 = vadd.f32 %v77, %v253
  %v255 = vpop.f32.mrb[0].mxu0
  %256 = vmatprep.mubr.f32.mxu0 0.0
  %257 = vmatmul.mubr.f32.gmra.mrb[0].mxu0 %v113
  %v258 = vpop.f32.mrb[0].mxu0
  %v259 = vadd.f32 %v82, %v258
  %v260 = vpop.f32.mrb[0].mxu0
  %261 = vmatprep.mubr.f32.mxu0 0.0
  %262 = vmatmul.mubr.f32.gmra.mrb[0].mxu0 %v116
  %v263 = vpop.f32.mrb[0].mxu0
  %v264 = vadd.f32 %v87, %v263
  %v265 = vpop.f32.mrb[0].mxu0
  %266 = vmatprep.mubr.f32.mxu0 0.0
  %267 = vmatmul.mubr.f32.gmra.mrb[0].mxu0 %v119
  %v268 = vpop.f32.mrb[0].mxu0
  %v269 = vadd.f32 %v92, %v268
  %v270 = vpop.f32.mrb[0].mxu0
  %271 = vmatprep.mubr.f32.mxu0 0.0
  %272 = vmatmul.mubr.f32.gmra.mrb[0].mxu0 %v122
  %v273 = vpop.f32.mrb[0].mxu0
  %v274 = vadd.f32 %v97, %v273
  %v275 = vpop.f32.mrb[0].mxu0
  %276 = vdwg.mxu0
  %v277 = vmax.f32 %v239, 0.0
  %v278 = vmax.f32 %v244, 0.0
  %v279 = vmax.f32 %v249, 0.0
  %v280 = vmax.f32 %v254, 0.0
  %v281 = vmax.f32 %v259, 0.0
  %v282 = vmax.f32 %v264, 0.0
  %v283 = vmax.f32 %v269, 0.0
  %v284 = vmax.f32 %v274, 0.0
  %v285 = vld [vmem:[%s3] sm:$0xff]
  %v286 = vld [vmem:[%s3 + $0x8] sm:$0xff]
  %v287 = vld [vmem:[%s3 + $0x10] sm:$0xff]
  %v288 = vld [vmem:[%s3 + $0x18] sm:$0xff]
  %v289 = vld [vmem:[%s3 + $0x20] sm:$0xff]
  %v290 = vld [vmem:[%s3 + $0x28] sm:$0xff]
  %v291 = vld [vmem:[%s3 + $0x30] sm:$0xff]
  %v292 = vld [vmem:[%s3 + $0x38] sm:$0xff]
  %v293 = vld [vmem:[%s4] sm:$0xff]
  %v294 = vld [vmem:[%s4 + $0x8] sm:$0xff]
  %v295 = vld [vmem:[%s4 + $0x10] sm:$0xff]
  %v296 = vld [vmem:[%s4 + $0x18] sm:$0xff]
  %v297 = vld [vmem:[%s4 + $0x20] sm:$0xff]
  %v298 = vld [vmem:[%s4 + $0x28] sm:$0xff]
  %v299 = vld [vmem:[%s4 + $0x30] sm:$0xff]
  %v300 = vld [vmem:[%s4 + $0x38] sm:$0xff]
  %302 = vset.pattern.permute.xlu0 0
  %303 = vperm.xlu0 %302, %v293
  %v304 = vpop.permute.xlu0 %303
  %307 = vset.pattern.permute.xlu0 0
  %308 = vperm.xlu0 %307, %v294
  %v309 = vpop.permute.xlu0 %308
  %312 = vset.pattern.permute.xlu0 0
  %313 = vperm.xlu0 %312, %v295
  %v314 = vpop.permute.xlu0 %313
  %317 = vset.pattern.permute.xlu0 0
  %318 = vperm.xlu0 %317, %v296
  %v319 = vpop.permute.xlu0 %318
  %322 = vset.pattern.permute.xlu0 0
  %323 = vperm.xlu0 %322, %v297
  %v324 = vpop.permute.xlu0 %323
  %327 = vset.pattern.permute.xlu0 0
  %328 = vperm.xlu0 %327, %v298
  %v329 = vpop.permute.xlu0 %328
  %332 = vset.pattern.permute.xlu0 0
  %333 = vperm.xlu0 %332, %v299
  %v334 = vpop.permute.xlu0 %333
  %337 = vset.pattern.permute.xlu0 0
  %338 = vperm.xlu0 %337, %v300
  %v339 = vpop.permute.xlu0 %338
  %vm341 = vcmask 523264
  %v343 = vsel %vm341, %v285, 0
  %v346 = vsel %vm341, %v286, 0
  %v349 = vsel %vm341, %v287, 0
  %v352 = vsel %vm341, %v288, 0
  %v355 = vsel %vm341, %v289, 0
  %v358 = vsel %vm341, %v290, 0
  %v361 = vsel %vm341, %v291, 0
  %v364 = vsel %vm341, %v292, 0
  %366 = vmatprep.subr.mxu0 0.0
  %367 = vmatpush1.msra.mxu0 %v277
  %368 = vmatprep.subr.mxu0 0.0
  %369 = vmatpush1.msra.mxu0 %v278
  %370 = vmatprep.subr.mxu0 0.0
  %371 = vmatpush1.msra.mxu0 %v279
  %372 = vmatprep.subr.mxu0 0.0
  %373 = vmatpush1.msra.mxu0 %v280
  %374 = vmatprep.subr.mxu0 0.0
  %375 = vmatpush1.msra.mxu0 %v281
  %376 = vmatprep.subr.mxu0 0.0
  %377 = vmatpush1.msra.mxu0 %v282
  %378 = vmatprep.subr.mxu0 0.0
  %379 = vmatpush1.msra.mxu0 %v283
  %380 = vmatprep.subr.mxu0 0.0
  %381 = vmatpush1.msra.mxu0 %v284
  %382 = vmatprep.subr.mxu0 0.0
  %383 = vmatpush1.msra.mxu0 0.0
  %384 = vmatprep.subr.mxu0 0.0
  %385 = vmatpush1.msra.mxu0 0.0
  %386 = vmatprep.subr.mxu0 0.0
  %387 = vmatpush1.msra.mxu0 0.0
  %388 = vmatprep.subr.mxu0 0.0
  %389 = vmatpush1.msra.mxu0 0.0
  %390 = vmatprep.subr.mxu0 0.0
  %391 = vmatpush1.msra.mxu0 0.0
  %392 = vmatprep.subr.mxu0 0.0
  %393 = vmatpush1.msra.mxu0 0.0
  %394 = vmatprep.subr.mxu0 0.0
  %395 = vmatpush1.msra.mxu0 0.0
  %396 = vmatprep.subr.mxu0 0.0
  %397 = vmatpush1.msra.mxu0 0.0
  %398 = vmatprep.subr.mxu0 0.0
  %399 = vmatpush1.msra.mxu0 0.0
  %400 = vmatprep.subr.mxu0 0.0
  %401 = vmatpush1.msra.mxu0 0.0
  %402 = vmatprep.subr.mxu0 0.0
  %403 = vmatpush1.msra.mxu0 0.0
  %404 = vmatprep.subr.mxu0 0.0
  %405 = vmatpush1.msra.mxu0 0.0
  %406 = vmatprep.subr.mxu0 0.0
  %407 = vmatpush1.msra.mxu0 0.0
  %408 = vmatprep.subr.mxu0 0.0
  %409 = vmatpush1.msra.mxu0 0.0
  %410 = vmatprep.subr.mxu0 0.0
  %411 = vmatpush1.msra.mxu0 0.0
  %412 = vmatprep.subr.mxu0 0.0
  %413 = vmatpush1.msra.mxu0 0.0
  %414 = vmatprep.subr.mxu0 0.0
  %415 = vmatpush1.msra.mxu0 0.0
  %416 = vmatprep.subr.mxu0 0.0
  %417 = vmatpush1.msra.mxu0 0.0
  %418 = vmatprep.subr.mxu0 0.0
  %419 = vmatpush1.msra.mxu0 0.0
  %420 = vmatprep.subr.mxu0 0.0
  %421 = vmatpush1.msra.mxu0 0.0
  %422 = vmatprep.subr.mxu0 0.0
  %423 = vmatpush1.msra.mxu0 0.0
  %424 = vmatprep.subr.mxu0 0.0
  %425 = vmatpush1.msra.mxu0 0.0
  %426 = vmatprep.subr.mxu0 0.0
  %427 = vmatpush1.msra.mxu0 0.0
  %428 = vmatprep.subr.mxu0 0.0
  %429 = vmatpush1.msra.mxu0 0.0
  %430 = vmatprep.mubr.f32.mxu0 0.0
  %431 = vmatmul.mubr.f32.gmra.mrb[0].mxu0 %v343
  %v432 = vpop.f32.mrb[0].mxu0
  %v433 = vadd.f32 %v304, %v432
  %v434 = vpop.f32.mrb[0].mxu0
  %435 = vmatprep.mubr.f32.mxu0 0.0
  %436 = vmatmul.mubr.f32.gmra.mrb[0].mxu0 %v346
  %v437 = vpop.f32.mrb[0].mxu0
  %v438 = vadd.f32 %v309, %v437
  %v439 = vpop.f32.mrb[0].mxu0
  %440 = vmatprep.mubr.f32.mxu0 0.0
  %441 = vmatmul.mubr.f32.gmra.mrb[0].mxu0 %v349
  %v442 = vpop.f32.mrb[0].mxu0
  %v443 = vadd.f32 %v314, %v442
  %v444 = vpop.f32.mrb[0].mxu0
  %445 = vmatprep.mubr.f32.mxu0 0.0
  %446 = vmatmul.mubr.f32.gmra.mrb[0].mxu0 %v352
  %v447 = vpop.f32.mrb[0].mxu0
  %v448 = vadd.f32 %v319, %v447
  %v449 = vpop.f32.mrb[0].mxu0
  %450 = vmatprep.mubr.f32.mxu0 0.0
  %451 = vmatmul.mubr.f32.gmra.mrb[0].mxu0 %v355
  %v452 = vpop.f32.mrb[0].mxu0
  %v453 = vadd.f32 %v324, %v452
  %v454 = vpop.f32.mrb[0].mxu0
  %455 = vmatprep.mubr.f32.mxu0 0.0
  %456 = vmatmul.mubr.f32.gmra.mrb[0].mxu0 %v358
  %v457 = vpop.f32.mrb[0].mxu0
  %v458 = vadd.f32 %v329, %v457
  %v459 = vpop.f32.mrb[0].mxu0
  %460 = vmatprep.mubr.f32.mxu0 0.0
  %461 = vmatmul.mubr.f32.gmra.mrb[0].mxu0 %v361
  %v462 = vpop.f32.mrb[0].mxu0
  %v463 = vadd.f32 %v334, %v462
  %v464 = vpop.f32.mrb[0].mxu0
  %465 = vmatprep.mubr.f32.mxu0 0.0
  %466 = vmatmul.mubr.f32.gmra.mrb[0].mxu0 %v364
  %v467 = vpop.f32.mrb[0].mxu0
  %v468 = vadd.f32 %v339, %v467
  %v469 = vpop.f32.mrb[0].mxu0
  %470 = vdwg.mxu0
  %v471 = vmax.f32 %v433, 0.0
  %v472 = vmax.f32 %v438, 0.0
  %v473 = vmax.f32 %v443, 0.0
  %v474 = vmax.f32 %v448, 0.0
  %v475 = vmax.f32 %v453, 0.0
  %v476 = vmax.f32 %v458, 0.0
  %v477 = vmax.f32 %v463, 0.0
  %v478 = vmax.f32 %v468, 0.0
  %v479 = vld [vmem:[%s5] sm:$0xff]
  %v480 = vld [vmem:[%s5 + $0x8] sm:$0xff]
  %v481 = vld [vmem:[%s5 + $0x10] sm:$0xff]
  %v482 = vld [vmem:[%s5 + $0x18] sm:$0xff]
  %v483 = vld [vmem:[%s5 + $0x20] sm:$0xff]
  %v484 = vld [vmem:[%s5 + $0x28] sm:$0xff]
  %v485 = vld [vmem:[%s5 + $0x30] sm:$0xff]
  %v486 = vld [vmem:[%s5 + $0x38] sm:$0xff]
  %488 = vset.pattern.permute.xlu0 0
  %489 = vperm.xlu0 %488, %v479
  %v490 = vpop.permute.xlu0 %489
  %493 = vset.pattern.permute.xlu0 0
  %494 = vperm.xlu0 %493, %v480
  %v495 = vpop.permute.xlu0 %494
  %498 = vset.pattern.permute.xlu0 0
  %499 = vperm.xlu0 %498, %v481
  %v500 = vpop.permute.xlu0 %499
  %503 = vset.pattern.permute.xlu0 0
  %504 = vperm.xlu0 %503, %v482
  %v505 = vpop.permute.xlu0 %504
  %508 = vset.pattern.permute.xlu0 0
  %509 = vperm.xlu0 %508, %v483
  %v510 = vpop.permute.xlu0 %509
  %513 = vset.pattern.permute.xlu0 0
  %514 = vperm.xlu0 %513, %v484
  %v515 = vpop.permute.xlu0 %514
  %518 = vset.pattern.permute.xlu0 0
  %519 = vperm.xlu0 %518, %v485
  %v520 = vpop.permute.xlu0 %519
  %523 = vset.pattern.permute.xlu0 0
  %524 = vperm.xlu0 %523, %v486
  %v525 = vpop.permute.xlu0 %524
  %v527 = vmul.f32 %v471, %v490
  %v528 = vmul.f32 %v472, %v495
  %v529 = vmul.f32 %v473, %v500
  %v530 = vmul.f32 %v474, %v505
  %v531 = vmul.f32 %v475, %v510
  %v532 = vmul.f32 %v476, %v515
  %v533 = vmul.f32 %v477, %v520
  %v534 = vmul.f32 %v478, %v525
  %v535 = vadd.f32 %v527, %v528
  %v536 = vadd.f32 %v535, %v529
  %v537 = vadd.f32 %v536, %v530
  %v538 = vadd.f32 %v537, %v531
  %v539 = vadd.f32 %v538, %v532
  %v540 = vadd.f32 %v539, %v533
  %v541 = vadd.f32 %v540, %v534
  %v542 = vrot.slane %v541, 4
  %v543 = vadd.f32 %v541, %v542
  %v544 = vrot.slane %v543, 2
  %v545 = vadd.f32 %v543, %v544
  %v546 = vrot.slane %v545, 1
  %v547 = vadd.f32 %v545, %v546
  %s548 = sld [smem:[#allocation2]]
  %v549 = vstv %s548
  %v550 = vadd.f32 %v547, %v549
  %551 = vst [vmem:[%s7] sm:$0x1] %v550
  // Predicated region
  $region30: #{critic_forward.1} parent=0 // pred_check
    _
  $region31: #{critic_forward.1} parent=0 // pred_check_branch
    %553 = sbr.rel (0) target = $region33
  $region32: #{critic_forward.1} parent=0 // pred_region
    _
  $region33: #{critic_forward.1} parent=0 // pred_fallthru
    _
  // Predicated region
  $region34: #{critic_forward.1} parent=0 // pred_check
    _
  $region35: #{critic_forward.1} parent=0 // pred_check_branch
    %555 = sbr.rel (0) target = $region37
  $region36: #{critic_forward.1} parent=0 // pred_region
    _
  $region37: #{critic_forward.1} parent=0 // pred_fallthru
    _

</llo_original>
